<compile_context>
chip_gen: v5e
topology: v5e:2x2
jax: 0.10.0
libtpu: 0.0.40
codegen_flags: <defaults>
</compile_context>

<pallas_src>
import functools

import numpy as np

import jax
import jax.numpy as jnp
from jax import lax
from jax.experimental import pallas as pl
from jax.experimental.pallas import tpu as pltpu

LANE = 128
MiB = 1024 * 1024


# ----------------------------- helpers ---------------------------------------
def _round_up(x, m):
    return (x + m - 1) // m * m


def _pad2(x, rows, cols):
    return jnp.pad(x, ((0, rows - x.shape[0]), (0, cols - x.shape[1])))


def _vmem_cap_bytes():
    try:
        info = pltpu.get_tpu_info()
        cap = int(getattr(info, "vmem_capacity_bytes", 0))
        if cap > 0:
            return cap
    except Exception:
        pass
    return 64 * MiB  # conservative (v7x per-core) fallback


def _vmem_limit_bytes():
    return int(max(32 * MiB, _vmem_cap_bytes() - 16 * MiB))


def _masked_log_softmax(z, nvalid):
    """log_softmax over the first `nvalid` lanes; padded lanes get 0 (not -inf)."""
    col = lax.broadcasted_iota(jnp.int32, z.shape, 1)
    valid = col < nvalid
    zm = jnp.where(valid, z, -jnp.inf)
    mx = jnp.max(zm, axis=1, keepdims=True)
    ex = jnp.where(valid, jnp.exp(zm - mx), 0.0)
    s = jnp.sum(ex, axis=1, keepdims=True)
    return jnp.where(valid, zm - mx - jnp.log(s), 0.0)


# ======================= Path 1: fully fused (small graphs) ===================
def _gcn_fused_kernel(nclass, a_ref, x_ref, w1_ref, b1_ref, w2_ref, b2_ref, o_ref):
    bf = jnp.bfloat16
    a = a_ref[...]
    xw1 = jnp.dot(x_ref[...], w1_ref[...], preferred_element_type=jnp.float32)
    h = jnp.maximum(
        jnp.dot(a, xw1.astype(bf), preferred_element_type=jnp.float32) + b1_ref[...],
        0.0)
    # Dropout: module evaluated in inference mode -> identity.
    # TODO(synk): training-mode dropout would use pltpu.prng_seed / prng_random_bits.
    hw2 = jnp.dot(h.astype(bf), w2_ref[...], preferred_element_type=jnp.float32)
    z = jnp.dot(a, hw2.astype(bf), preferred_element_type=jnp.float32) + b2_ref[...]
    o_ref[...] = _masked_log_softmax(z, nclass).astype(o_ref.dtype)


def _gcn_forward_fused(a_hat, x, w1, b1, w2, b2):
    n, nfeat = x.shape
    nhid, nclass = w1.shape[1], w2.shape[1]
    n_p, f_p = _round_up(n, LANE), _round_up(nfeat, LANE)
    h_p, c_p = _round_up(nhid, LANE), _round_up(nclass, LANE)

    bf = jnp.bfloat16
    a_p = _pad2(a_hat, n_p, n_p).astype(bf)
    x_p = _pad2(x, n_p, f_p).astype(bf)
    w1_p = _pad2(w1, f_p, h_p).astype(bf)
    w2_p = _pad2(w2, h_p, c_p).astype(bf)
    b1_p = _pad2(b1, 1, h_p).astype(jnp.float32)
    b2_p = _pad2(b2, 1, c_p).astype(jnp.float32)

    flops = 2 * (n_p * f_p * h_p + n_p * n_p * h_p + n_p * h_p * c_p + n_p * n_p * c_p)
    in_bytes = sum(int(t.size) * t.dtype.itemsize
                   for t in (a_p, x_p, w1_p, w2_p, b1_p, b2_p))
    cost = pl.CostEstimate(flops=flops, transcendentals=n_p * c_p,
                           bytes_accessed=in_bytes + n_p * c_p * 4)

    vmem_spec = pl.BlockSpec(memory_space=pltpu.MemorySpace.VMEM)
    out = pl.pallas_call(
        functools.partial(_gcn_fused_kernel, nclass),
        out_shape=jax.ShapeDtypeStruct((n_p, c_p), jnp.float32),
        in_specs=[vmem_spec] * 6,
        out_specs=vmem_spec,
        compiler_params=pltpu.CompilerParams(vmem_limit_bytes=_vmem_limit_bytes()),
        cost_estimate=cost,
    )(a_p, x_p, w1_p, b1_p, w2_p, b2_p)
    return out[:n, :nclass]


_gcn_forward_fused_jit = jax.jit(_gcn_forward_fused)


def _fused_fits(n_p, f_p, h_p, c_p):
    need = 2 * (n_p * n_p + n_p * f_p + f_p * h_p + h_p * c_p)   # bf16 operands
    need += 4 * (h_p + c_p)                                      # biases
    need += 4 * n_p * c_p                                        # f32 output
    need += 4 * n_p * (2 * h_p + 2 * c_p)                        # f32 intermediates
    return 2 * need <= _vmem_cap_bytes() - 16 * MiB


# ================== Path 2: tiled block-CSR (large graphs) ====================
# --- bias-free, activation-free row-tiled matmul (weights stay resident) ------
def _mm_rows_kernel(a_ref, b_ref, o_ref):
    o_ref[...] = jnp.dot(a_ref[...], b_ref[...],
                         preferred_element_type=jnp.float32).astype(o_ref.dtype)


def _matmul_rows(a, b, *, out_dtype, tm):
    m, k = a.shape
    k2, ncols = b.shape
    assert k == k2 and m % tm == 0
    gm = m // tm
    cost = pl.CostEstimate(
        flops=2 * m * k * ncols, transcendentals=0,
        bytes_accessed=int(a.size * a.dtype.itemsize + b.size * b.dtype.itemsize
                           + m * ncols * jnp.dtype(out_dtype).itemsize))
    return pl.pallas_call(
        _mm_rows_kernel,
        out_shape=jax.ShapeDtypeStruct((m, ncols), out_dtype),
        grid=(gm,),
        in_specs=[pl.BlockSpec((tm, k), lambda i: (i, 0)),
                  pl.BlockSpec((k, ncols), lambda i: (0, 0))],   # weights resident
        out_specs=pl.BlockSpec((tm, ncols), lambda i: (i, 0)),
        compiler_params=pltpu.CompilerParams(
            dimension_semantics=("parallel",),
            vmem_limit_bytes=_vmem_limit_bytes()),
        cost_estimate=cost,
    )(a, b)


# --- block-CSR adjacency matmul: act(A @ B + bias) -----------------------------
def _adj_csr_kernel(activation, nvalid_cols, max_nnz, tk, b_resident,
                    col_ref, nnz_ref, a_ref, b_ref, bias_ref, o_ref, acc_ref):
    i = pl.program_id(0)
    j = pl.program_id(1)

    @pl.when(j == 0)
    def _():
        acc_ref[...] = jnp.zeros_like(acc_ref)

    # Only the compacted list of nonzero A blocks is ever visited / DMA'd;
    # the ragged tail (j >= nnz) re-DMAs a clamped block but skips compute.
    @pl.when(j < nnz_ref[i])
    def _():
        if b_resident:
            cb = col_ref[i * max_nnz + j]
            off = pl.multiple_of(cb * tk, tk)
            b_tile = b_ref[pl.ds(off, tk), :]
        else:
            b_tile = b_ref[...]
        acc_ref[...] += jnp.dot(a_ref[...], b_tile,
                                preferred_element_type=jnp.float32)

    # Bias + activation only at the last reduction step (hoisted out of the loop).
    @pl.when(j == pl.num_programs(1) - 1)
    def _():
        z = acc_ref[...] + bias_ref[...]
        if activation == "relu":
            z = jnp.maximum(z, 0.0)
        elif activation == "log_softmax":
            z = _masked_log_softmax(z, nvalid_cols)
        o_ref[...] = z.astype(o_ref.dtype)


def _adj_matmul_csr(a, b, bias, col_idx, nnz, max_nnz, nnz_total, *,
                    activation, nvalid_cols, out_dtype, tm, tk):
    m, k = a.shape
    k2, ncols = b.shape
    assert k == k2 and m % tm == 0 and k % tk == 0
    gm = m // tm

    cap = _vmem_cap_bytes()
    b_bytes = int(b.size * b.dtype.itemsize)
    # Keep B fully VMEM-resident when it fits a generation-aware budget; this is
    # the main cut to the gm-fold B re-DMA (smaller cap on v7x's 64 MiB VMEM).
    b_resident = (2 * b_bytes) <= (cap // 4)

    if b_resident:
        b_spec = pl.BlockSpec((k, ncols), lambda i, j, ci, nz: (0, 0))
    else:
        b_spec = pl.BlockSpec((tk, ncols),
                              lambda i, j, ci, nz: (ci[i * max_nnz + j], 0))

    kernel = functools.partial(_adj_csr_kernel, activation, nvalid_cols,
                               max_nnz, tk, b_resident)
    # TODO(synk): optionally sweep pipeline_mode=pl.Buffered(3) on the A spec.
    grid_spec = pltpu.PrefetchScalarGridSpec(
        num_scalar_prefetch=2,                      # col_idx (1-D), nnz (1-D) -> SMEM
        grid=(gm, max_nnz),
        in_specs=[
            pl.BlockSpec((tm, tk), lambda i, j, ci, nz: (i, ci[i * max_nnz + j])),
            b_spec,
            pl.BlockSpec((1, ncols), lambda i, j, ci, nz: (0, 0)),
        ],
        out_specs=pl.BlockSpec((tm, ncols), lambda i, j, ci, nz: (i, 0)),
        scratch_shapes=[pltpu.VMEM((tm, ncols), jnp.float32)],
    )

    bytes_a = nnz_total * tm * tk * a.dtype.itemsize
    bytes_b = b_bytes if b_resident else nnz_total * tk * ncols * b.dtype.itemsize
    cost = pl.CostEstimate(
        flops=2 * nnz_total * tm * tk * ncols,
        transcendentals=(m * ncols if activation == "log_softmax" else 0),
        bytes_accessed=int(bytes_a + bytes_b + bias.size * 4
                           + m * ncols * jnp.dtype(out_dtype).itemsize))

    return pl.pallas_call(
        kernel,
        grid_spec=grid_spec,
        out_shape=jax.ShapeDtypeStruct((m, ncols), out_dtype),
        compiler_params=pltpu.CompilerParams(
            dimension_semantics=("parallel", "arbitrary"),
            vmem_limit_bytes=_vmem_limit_bytes()),
        cost_estimate=cost,
    )(col_idx, nnz, a, b, bias)


def _block_csr_structure(a_np, tm, tk):
    """Compacted per-row-block nonzero column-block indices (host preprocessing)."""
    gm, gk = a_np.shape[0] // tm, a_np.shape[1] // tk
    mask = (a_np.reshape(gm, tm, gk, tk) != 0).any(axis=(1, 3))
    nnz = mask.sum(axis=1).astype(np.int32)
    max_nnz = max(int(nnz.max()), 1)
    col_idx = np.zeros((gm, max_nnz), dtype=np.int32)
    for r in range(gm):
        cols = np.flatnonzero(mask[r]).astype(np.int32)
        if cols.size:
            col_idx[r, :cols.size] = cols
            col_idx[r, cols.size:] = cols[-1]   # clamp: padded steps DMA a valid tile
    return col_idx.reshape(-1), nnz, max_nnz, int(nnz.sum())


def _pick_adj_tm(n_p, ncols):
    budget = max(_vmem_cap_bytes() - 24 * MiB, 8 * MiB)
    for t in (2048, 1024, 512, 256, 128):
        if n_p % t:
            continue
        need = 3 * t * LANE * 2 + 2 * t * ncols * 4 + t * ncols * 4
        if need <= budget // 2:
            return t
    return LANE


def _pick_mm_tm(n_p, k, ncols):
    budget = max(_vmem_cap_bytes() - 24 * MiB, 8 * MiB)
    for t in (1024, 512, 256, 128):
        if n_p % t:
            continue
        need = 2 * t * k * 2 + 2 * t * ncols * 2 + 2 * k * ncols * 2
        if need <= budget // 2:
            return t
    return LANE


def _gcn_forward_tiled(a_hat, x, w1, b1, w2, b2):
    n, nfeat = x.shape
    nhid, nclass = w1.shape[1], w2.shape[1]
    n_p, f_p = _round_up(n, LANE), _round_up(nfeat, LANE)
    h_p, c_p = _round_up(nhid, LANE), _round_up(nclass, LANE)

    bf = jnp.bfloat16
    a_p = _pad2(a_hat, n_p, n_p).astype(bf)
    x_p = _pad2(x, n_p, f_p).astype(bf)
    w1_p = _pad2(w1, f_p, h_p).astype(bf)
    w2_p = _pad2(w2, h_p, c_p).astype(bf)
    b1_p = _pad2(b1, 1, h_p).astype(jnp.float32)
    b2_p = _pad2(b2, 1, c_p).astype(jnp.float32)

    tk = LANE
    tm = _pick_adj_tm(n_p, max(h_p, c_p))

    # Host-side preprocessing of the (static) graph: block-CSR structure of A_hat.
    a_np = np.zeros((n_p, n_p), np.float32)
    a_np[:n, :n] = np.asarray(jax.device_get(a_hat), np.float32)
    col_idx_np, nnz_np, max_nnz, nnz_total = _block_csr_structure(a_np, tm, tk)
    col_idx = jnp.asarray(col_idx_np)
    nnz = jnp.asarray(nnz_np)

    tm_mm = _pick_mm_tm(n_p, max(f_p, h_p), max(h_p, c_p))

    # GCNConv 1:  H = relu(A_hat @ (X @ W1) + b1)
    xw1 = _matmul_rows(x_p, w1_p, out_dtype=bf, tm=tm_mm)
    h = _adj_matmul_csr(a_p, xw1, b1_p, col_idx, nnz, max_nnz, nnz_total,
                        activation="relu", nvalid_cols=h_p,
                        out_dtype=bf, tm=tm, tk=tk)
    # Dropout: inference mode -> identity.
    # TODO(synk): training-mode dropout would use pltpu.prng_seed / prng_random_bits.

    # GCNConv 2 + log_softmax:  log_softmax(A_hat @ (H @ W2) + b2)
    hw2 = _matmul_rows(h, w2_p, out_dtype=bf, tm=tm_mm)
    z = _adj_matmul_csr(a_p, hw2, b2_p, col_idx, nnz, max_nnz, nnz_total,
                        activation="log_softmax", nvalid_cols=nclass,
                        out_dtype=jnp.float32, tm=tm, tk=tk)
    return z[:n, :nclass]


# ------------------------------- dispatcher ------------------------------------
def gcn_forward(a_hat, x, w1, b1, w2, b2, *, force_tiled=False):
    n, nfeat = x.shape
    nhid, nclass = w1.shape[1], w2.shape[1]
    n_p, f_p = _round_up(n, LANE), _round_up(nfeat, LANE)
    h_p, c_p = _round_up(nhid, LANE), _round_up(nclass, LANE)
    if not force_tiled and _fused_fits(n_p, f_p, h_p, c_p):
        return _gcn_forward_fused_jit(a_hat, x, w1, b1, w2, b2)
    return _gcn_forward_tiled(a_hat, x, w1, b1, w2, b2)


# ------------------------------- JAX glue --------------------------------------
def normalized_adjacency(edge_idx, n):
    """Dense D^-1/2 (A + I) D^-1/2, matching PyG GCNConv default normalization."""
    src, dst = edge_idx[0], edge_idx[1]
    loop = jnp.arange(n, dtype=edge_idx.dtype)
    src = jnp.concatenate([src, loop])
    dst = jnp.concatenate([dst, loop])
    a = jnp.zeros((n, n), jnp.float32).at[dst, src].add(1.0)   # message src -> dst
    deg = jnp.sum(a, axis=1)
    dinv = jnp.where(deg > 0, lax.rsqrt(deg), 0.0)
    return a * dinv[:, None] * dinv[None, :]


def init_params(key, nfeat, nhid, nclass):
    k1, k2 = jax.random.split(key)

    def glorot(k, fan_in, fan_out):
        lim = jnp.sqrt(6.0 / (fan_in + fan_out))
        return jax.random.uniform(k, (fan_in, fan_out), jnp.float32, -lim, lim)

    w1 = glorot(k1, nfeat, nhid)
    w2 = glorot(k2, nhid, nclass)
    b1 = jnp.zeros((1, nhid), jnp.float32)
    b2 = jnp.zeros((1, nclass), jnp.float32)
    return w1, b1, w2, b2


def gcn_reference(a_hat, x, w1, b1, w2, b2):
    """JAX reference with the same bf16-operand / f32-accumulate numerics as the kernel."""
    bf = jnp.bfloat16

    def mm(p, q):
        return jnp.dot(p.astype(bf), q.astype(bf), preferred_element_type=jnp.float32)

    xw1 = mm(x, w1).astype(bf)
    h = jnp.maximum(mm(a_hat, xw1) + b1, 0.0).astype(bf)
    hw2 = mm(h, w2).astype(bf)
    z = mm(a_hat, hw2) + b2
    return jax.nn.log_softmax(z, axis=1)


def make_graph(key, n, n_chords, chord_hop):
    ring_src = jnp.arange(n, dtype=jnp.int32)
    ring_dst = (ring_src + 1) % n
    extra_src = jax.random.randint(key, (n_chords,), 0, n, jnp.int32)
    extra_dst = (extra_src + chord_hop) % n
    src = jnp.concatenate([ring_src, ring_dst, extra_src])
    dst = jnp.concatenate([ring_dst, ring_src, extra_dst])
    return jnp.stack([src, dst], axis=0)


# --------------------------------- main -----------------------------------------
if __name__ == "__main__":
    key = jax.random.PRNGKey(0)
    kx, kp, ke, kx2, kp2, ke2 = jax.random.split(key, 6)

    # ---- demo size (fully fused single-kernel path) ----
    N, NFEAT, NHID, NCLASS = 8, 32, 16, 8
    x = jax.random.normal(kx, (N, NFEAT), jnp.float32)
    edge_idx = make_graph(ke, N, 4, 3)
    a_hat = normalized_adjacency(edge_idx, N)
    w1, b1, w2, b2 = init_params(kp, NFEAT, NHID, NCLASS)

    out = gcn_forward(a_hat, x, w1, b1, w2, b2)
    out = jax.block_until_ready(out)
    ref = gcn_reference(a_hat, x, w1, b1, w2, b2)
    assert out.shape == (N, NCLASS)
    assert jnp.allclose(out, ref, atol=1e-2, rtol=1e-2), "fused path mismatch"

    # ---- larger size (tiled block-CSR path, exercised explicitly) ----
    N2, F2, H2, C2 = 300, 200, 48, 10
    x2 = jax.random.normal(kx2, (N2, F2), jnp.float32)
    edge_idx2 = make_graph(ke2, N2, 64, 7)
    a_hat2 = normalized_adjacency(edge_idx2, N2)
    w1_2, b1_2, w2_2, b2_2 = init_params(kp2, F2, H2, C2)

    out2 = gcn_forward(a_hat2, x2, w1_2, b1_2, w2_2, b2_2, force_tiled=True)
    out2 = jax.block_until_ready(out2)
    ref2 = gcn_reference(a_hat2, x2, w1_2, b1_2, w2_2, b2_2)
    assert out2.shape == (N2, C2)
    assert jnp.allclose(out2, ref2, atol=2e-2, rtol=2e-2), "tiled path mismatch"

    print("KERNEL_OK")
</pallas_src>

<mosaic_0001>
module attributes {stable_mosaic.version = 11 : i64} {
  func.func @_gcn_fused_kernel(%arg0: memref<128x128xbf16, #tpu.memory_space<vmem>>, %arg1: memref<128x128xbf16, #tpu.memory_space<vmem>>, %arg2: memref<128x128xbf16, #tpu.memory_space<vmem>>, %arg3: memref<1x128xf32, #tpu.memory_space<vmem>>, %arg4: memref<128x128xbf16, #tpu.memory_space<vmem>>, %arg5: memref<1x128xf32, #tpu.memory_space<vmem>>, %arg6: memref<128x128xf32, #tpu.memory_space<vmem>>) attributes {dimension_semantics = [], scalar_prefetch = 0 : i64, scratch_operands = 0 : i64, tpu.core_type = #tpu.core_type<tc>} {
    %c0 = arith.constant 0 : index
    %c0_0 = arith.constant 0 : index
    %0 = vector.load %arg0[%c0, %c0_0] : memref<128x128xbf16, #tpu.memory_space<vmem>>, vector<128x128xbf16>
    %c0_1 = arith.constant 0 : index
    %c0_2 = arith.constant 0 : index
    %1 = vector.load %arg1[%c0_1, %c0_2] : memref<128x128xbf16, #tpu.memory_space<vmem>>, vector<128x128xbf16>
    %c0_3 = arith.constant 0 : index
    %c0_4 = arith.constant 0 : index
    %2 = vector.load %arg2[%c0_3, %c0_4] : memref<128x128xbf16, #tpu.memory_space<vmem>>, vector<128x128xbf16>
    %cst = arith.constant dense<0.000000e+00> : vector<128x128xf32>
    %3 = tpu.matmul %1, %2, %cst {dimension_numbers = #tpu.dot_dimension_numbers<[1], [0], [0], [1], [0, 0, 1, 1], [], []>} : vector<128x128xbf16>, vector<128x128xbf16>, vector<128x128xf32> -> vector<128x128xf32>
    %4 = arith.truncf %3 : vector<128x128xf32> to vector<128x128xbf16>
    %cst_5 = arith.constant dense<0.000000e+00> : vector<128x128xf32>
    %5 = tpu.matmul %0, %4, %cst_5 {dimension_numbers = #tpu.dot_dimension_numbers<[1], [0], [0], [1], [0, 0, 1, 1], [], []>} : vector<128x128xbf16>, vector<128x128xbf16>, vector<128x128xf32> -> vector<128x128xf32>
    %c0_6 = arith.constant 0 : index
    %c0_7 = arith.constant 0 : index
    %6 = vector.load %arg3[%c0_6, %c0_7] : memref<1x128xf32, #tpu.memory_space<vmem>>, vector<1x128xf32>
    %7 = vector.broadcast %6 : vector<1x128xf32> to vector<128x128xf32>
    %8 = arith.addf %5, %7 : vector<128x128xf32>
    %cst_8 = arith.constant 0.000000e+00 : f32
    %9 = vector.broadcast %cst_8 : f32 to vector<128x128xf32>
    %10 = arith.maximumf %8, %9 : vector<128x128xf32>
    %11 = arith.truncf %10 : vector<128x128xf32> to vector<128x128xbf16>
    %c0_9 = arith.constant 0 : index
    %c0_10 = arith.constant 0 : index
    %12 = vector.load %arg4[%c0_9, %c0_10] : memref<128x128xbf16, #tpu.memory_space<vmem>>, vector<128x128xbf16>
    %cst_11 = arith.constant dense<0.000000e+00> : vector<128x128xf32>
    %13 = tpu.matmul %11, %12, %cst_11 {dimension_numbers = #tpu.dot_dimension_numbers<[1], [0], [0], [1], [0, 0, 1, 1], [], []>} : vector<128x128xbf16>, vector<128x128xbf16>, vector<128x128xf32> -> vector<128x128xf32>
    %14 = arith.truncf %13 : vector<128x128xf32> to vector<128x128xbf16>
    %cst_12 = arith.constant dense<0.000000e+00> : vector<128x128xf32>
    %15 = tpu.matmul %0, %14, %cst_12 {dimension_numbers = #tpu.dot_dimension_numbers<[1], [0], [0], [1], [0, 0, 1, 1], [], []>} : vector<128x128xbf16>, vector<128x128xbf16>, vector<128x128xf32> -> vector<128x128xf32>
    %c0_13 = arith.constant 0 : index
    %c0_14 = arith.constant 0 : index
    %16 = vector.load %arg5[%c0_13, %c0_14] : memref<1x128xf32, #tpu.memory_space<vmem>>, vector<1x128xf32>
    %17 = vector.broadcast %16 : vector<1x128xf32> to vector<128x128xf32>
    %18 = arith.addf %15, %17 : vector<128x128xf32>
    %19 = tpu.iota {dimensions = array<i32: 1>} : vector<128x128xi32>
    %c8_i32 = arith.constant 8 : i32
    %20 = vector.broadcast %c8_i32 : i32 to vector<128x128xi32>
    %21 = arith.cmpi slt, %19, %20 : vector<128x128xi32>
    %cst_15 = arith.constant 0xFF800000 : f32
    %22 = vector.broadcast %cst_15 : f32 to vector<128x128xf32>
    %23 = arith.select %21, %18, %22 : vector<128x128xi1>, vector<128x128xf32>
    %cst_16 = arith.constant dense<0xFF800000> : vector<128xf32>
    %24 = vector.multi_reduction <maximumf>, %23, %cst_16 [1] : vector<128x128xf32> to vector<128xf32>
    %25 = vector.shape_cast %24 : vector<128xf32> to vector<128x1xf32>
    %26 = vector.broadcast %25 : vector<128x1xf32> to vector<128x128xf32>
    %27 = arith.subf %23, %26 : vector<128x128xf32>
    %28 = math.exp %27 : vector<128x128xf32>
    %cst_17 = arith.constant 0.000000e+00 : f32
    %29 = vector.broadcast %cst_17 : f32 to vector<128x128xf32>
    %30 = arith.select %21, %28, %29 : vector<128x128xi1>, vector<128x128xf32>
    %cst_18 = arith.constant dense<0.000000e+00> : vector<128xf32>
    %31 = vector.multi_reduction <add>, %30, %cst_18 [1] : vector<128x128xf32> to vector<128xf32>
    %32 = vector.shape_cast %31 : vector<128xf32> to vector<128x1xf32>
    %33 = vector.broadcast %25 : vector<128x1xf32> to vector<128x128xf32>
    %34 = arith.subf %23, %33 : vector<128x128xf32>
    %35 = math.log %32 : vector<128x1xf32>
    %36 = vector.broadcast %35 : vector<128x1xf32> to vector<128x128xf32>
    %37 = arith.subf %34, %36 : vector<128x128xf32>
    %cst_19 = arith.constant 0.000000e+00 : f32
    %38 = vector.broadcast %cst_19 : f32 to vector<128x128xf32>
    %39 = arith.select %21, %37, %38 : vector<128x128xi1>, vector<128x128xf32>
    %c0_20 = arith.constant 0 : index
    %c0_21 = arith.constant 0 : index
    %40 = vector.load %arg6[%c0_20, %c0_21] : memref<128x128xf32, #tpu.memory_space<vmem>>, vector<128x128xf32>
    tpu.vector_store %arg6[%c0_20, %c0_21], %39 {strides = array<i32>} : memref<128x128xf32, #tpu.memory_space<vmem>>, vector<128x128xf32>,
    return
  }
}

</mosaic_0001>

<llo_original>
// kernel: _gcn_forward_fused.1
$region0: #{_gcn_forward_fused.1}
  #allocation0 [shape = 'u32[]', space=smem, size = 0x4, offset = 0x4, fixed_abs, tag = 'smem constant byte address 0x4 - core index']
  #allocation1 [shape = 'u32[72,128]{1,0:T(1,128)}', space=vmem, size = 0x9000, scoped, tag = 'internal scratch']
  %s0 = inlined_call_operand.vmem [shape: bf16[128,128], index: 0, kind: input, shape index: {}]
  %s1 = inlined_call_operand.vmem [shape: bf16[128,128], index: 1, kind: input, shape index: {}]
  %s2 = inlined_call_operand.vmem [shape: bf16[128,128], index: 2, kind: input, shape index: {}]
  %s3 = inlined_call_operand.vmem [shape: f32[1,128], index: 3, kind: input, shape index: {}]
  %s4 = inlined_call_operand.vmem [shape: bf16[128,128], index: 4, kind: input, shape index: {}]
  %s5 = inlined_call_operand.vmem [shape: f32[1,128], index: 5, kind: input, shape index: {}]
  %s6 = inlined_call_operand.vmem [shape: f32[128,128], index: 6, kind: output, shape index: {}]
  %s7 = sld [smem:[#allocation0]]
  $region34: #{_gcn_forward_fused.1} parent=0
    _
  %s9 = ssub.s32 1, %s7
  %s10 = scalar_select 0, %s9, %s7
  // Predicated region
  $region2: #{_gcn_forward_fused.1} parent=0 // pred_check
    _
  $region3: #{_gcn_forward_fused.1} parent=0 // pred_check_branch
    %12 = sbr.rel (0) target = $region5
  $region4: #{_gcn_forward_fused.1} parent=0 // pred_region
    _
  $region5: #{_gcn_forward_fused.1} parent=0 // pred_fallthru
    _
  // Predicated region
  $region6: #{_gcn_forward_fused.1} parent=0 // pred_check
    _
  $region7: #{_gcn_forward_fused.1} parent=0 // pred_check_branch
    %14 = sbr.rel (0) target = $region9
  $region8: #{_gcn_forward_fused.1} parent=0 // pred_region
    _
  $region9: #{_gcn_forward_fused.1} parent=0 // pred_fallthru
    _
  // Predicated region
  $region10: #{_gcn_forward_fused.1} parent=0 // pred_check
    _
  $region11: #{_gcn_forward_fused.1} parent=0 // pred_check_branch
    %16 = sbr.rel (0) target = $region13
  $region12: #{_gcn_forward_fused.1} parent=0 // pred_region
    _
  $region13: #{_gcn_forward_fused.1} parent=0 // pred_fallthru
    _
  // Predicated region
  $region14: #{_gcn_forward_fused.1} parent=0 // pred_check
    _
  $region15: #{_gcn_forward_fused.1} parent=0 // pred_check_branch
    %18 = sbr.rel (0) target = $region17
  $region16: #{_gcn_forward_fused.1} parent=0 // pred_region
    _
  $region17: #{_gcn_forward_fused.1} parent=0 // pred_fallthru
    _
  // Predicated region
  $region18: #{_gcn_forward_fused.1} parent=0 // pred_check
    _
  $region19: #{_gcn_forward_fused.1} parent=0 // pred_check_branch
    %20 = sbr.rel (0) target = $region21
  $region20: #{_gcn_forward_fused.1} parent=0 // pred_region
    _
  $region21: #{_gcn_forward_fused.1} parent=0 // pred_fallthru
    _
  // Predicated region
  $region22: #{_gcn_forward_fused.1} parent=0 // pred_check
    _
  $region23: #{_gcn_forward_fused.1} parent=0 // pred_check_branch
    %22 = sbr.rel (0) target = $region25
  $region24: #{_gcn_forward_fused.1} parent=0 // pred_region
    _
  $region25: #{_gcn_forward_fused.1} parent=0 // pred_fallthru
    _
  %v23 = vld [vmem:[%s0] sm:$0xf]
  %v24 = vld [vmem:[%s0 + $0x4] sm:$0xf]
  %v25 = vld [vmem:[%s0 + $0x8] sm:$0xf]
  %v26 = vld [vmem:[%s0 + $0xc] sm:$0xf]
  %v27 = vld [vmem:[%s0 + $0x10] sm:$0xf]
  %v28 = vld [vmem:[%s0 + $0x14] sm:$0xf]
  %v29 = vld [vmem:[%s0 + $0x18] sm:$0xf]
  %v30 = vld [vmem:[%s0 + $0x1c] sm:$0xf]
  %v31 = vld [vmem:[%s0 + $0x20] sm:$0xf]
  %v32 = vld [vmem:[%s0 + $0x24] sm:$0xf]
  %v33 = vld [vmem:[%s0 + $0x28] sm:$0xf]
  %v34 = vld [vmem:[%s0 + $0x2c] sm:$0xf]
  %v35 = vld [vmem:[%s0 + $0x30] sm:$0xf]
  %v36 = vld [vmem:[%s0 + $0x34] sm:$0xf]
  %v37 = vld [vmem:[%s0 + $0x38] sm:$0xf]
  %v38 = vld [vmem:[%s0 + $0x3c] sm:$0xf]
  %v39 = vld [vmem:[%s1] sm:$0xf]
  %v40 = vld [vmem:[%s1 + $0x4] sm:$0xf]
  %v41 = vld [vmem:[%s1 + $0x8] sm:$0xf]
  %v42 = vld [vmem:[%s1 + $0xc] sm:$0xf]
  %v43 = vld [vmem:[%s1 + $0x10] sm:$0xf]
  %v44 = vld [vmem:[%s1 + $0x14] sm:$0xf]
  %v45 = vld [vmem:[%s1 + $0x18] sm:$0xf]
  %v46 = vld [vmem:[%s1 + $0x1c] sm:$0xf]
  %v47 = vld [vmem:[%s1 + $0x20] sm:$0xf]
  %v48 = vld [vmem:[%s1 + $0x24] sm:$0xf]
  %v49 = vld [vmem:[%s1 + $0x28] sm:$0xf]
  %v50 = vld [vmem:[%s1 + $0x2c] sm:$0xf]
  %v51 = vld [vmem:[%s1 + $0x30] sm:$0xf]
  %v52 = vld [vmem:[%s1 + $0x34] sm:$0xf]
  %v53 = vld [vmem:[%s1 + $0x38] sm:$0xf]
  %v54 = vld [vmem:[%s1 + $0x3c] sm:$0xf]
  %v55 = vld [vmem:[%s2] sm:$0xf]
  %v56 = vld [vmem:[%s2 + $0x4] sm:$0xf]
  %v57 = vld [vmem:[%s2 + $0x8] sm:$0xf]
  %v58 = vld [vmem:[%s2 + $0xc] sm:$0xf]
  %v59 = vld [vmem:[%s2 + $0x10] sm:$0xf]
  %v60 = vld [vmem:[%s2 + $0x14] sm:$0xf]
  %v61 = vld [vmem:[%s2 + $0x18] sm:$0xf]
  %v62 = vld [vmem:[%s2 + $0x1c] sm:$0xf]
  %v63 = vld [vmem:[%s2 + $0x20] sm:$0xf]
  %v64 = vld [vmem:[%s2 + $0x24] sm:$0xf]
  %v65 = vld [vmem:[%s2 + $0x28] sm:$0xf]
  %v66 = vld [vmem:[%s2 + $0x2c] sm:$0xf]
  %v67 = vld [vmem:[%s2 + $0x30] sm:$0xf]
  %v68 = vld [vmem:[%s2 + $0x34] sm:$0xf]
  %v69 = vld [vmem:[%s2 + $0x38] sm:$0xf]
  %v70 = vld [vmem:[%s2 + $0x3c] sm:$0xf]
  %v87 = vunpack.c.l.b16 %v39
  %v88 = vunpack.c.l.b16 %v40
  %v89 = vunpack.c.l.b16 %v41
  %v90 = vunpack.c.l.b16 %v42
  %v91 = vunpack.c.l.b16 %v43
  %v92 = vunpack.c.l.b16 %v44
  %v93 = vunpack.c.l.b16 %v45
  %v94 = vunpack.c.l.b16 %v46
  %v95 = vunpack.c.l.b16 %v47
  %v96 = vunpack.c.l.b16 %v48
  %v97 = vunpack.c.l.b16 %v49
  %v98 = vunpack.c.l.b16 %v50
  %v99 = vunpack.c.l.b16 %v51
  %v100 = vunpack.c.l.b16 %v52
  %v101 = vunpack.c.l.b16 %v53
  %v102 = vunpack.c.l.b16 %v54
  %v103 = vpack.c.b16 %v88, %v87
  %v104 = vpack.c.b16 %v90, %v89
  %v105 = vpack.c.b16 %v92, %v91
  %v106 = vpack.c.b16 %v94, %v93
  %v107 = vpack.c.b16 %v96, %v95
  %v108 = vpack.c.b16 %v98, %v97
  %v109 = vpack.c.b16 %v100, %v99
  %v110 = vpack.c.b16 %v102, %v101
  %v135 = vunpack.c.l.b16 %v55
  %v136 = vunpack.c.l.b16 %v56
  %v137 = vunpack.c.l.b16 %v57
  %v138 = vunpack.c.l.b16 %v58
  %v139 = vunpack.c.l.b16 %v59
  %v140 = vunpack.c.l.b16 %v60
  %v141 = vunpack.c.l.b16 %v61
  %v142 = vunpack.c.l.b16 %v62
  %v143 = vunpack.c.l.b16 %v63
  %v144 = vunpack.c.l.b16 %v64
  %v145 = vunpack.c.l.b16 %v65
  %v146 = vunpack.c.l.b16 %v66
  %v147 = vunpack.c.l.b16 %v67
  %v148 = vunpack.c.l.b16 %v68
  %v149 = vunpack.c.l.b16 %v69
  %v150 = vunpack.c.l.b16 %v70
  %v151 = vpack.c.b16 %v136, %v135
  %v152 = vpack.c.b16 %v138, %v137
  %v153 = vpack.c.b16 %v140, %v139
  %v154 = vpack.c.b16 %v142, %v141
  %v155 = vpack.c.b16 %v144, %v143
  %v156 = vpack.c.b16 %v146, %v145
  %v157 = vpack.c.b16 %v148, %v147
  %v158 = vpack.c.b16 %v150, %v149
  %167 = vmatpush.bf16.msra.mxu0 %v158
  %168 = vmatpush.bf16.msra.mxu0 %v157
  %169 = vmatpush.bf16.msra.mxu0 %v156
  %170 = vmatpush.bf16.msra.mxu0 %v155
  %171 = vmatpush.bf16.msra.mxu0 %v154
  %172 = vmatpush.bf16.msra.mxu0 %v153
  %173 = vmatpush.bf16.msra.mxu0 %v152
  %174 = vmatpush.bf16.msra.mxu0 %v151
  %175 = vmatmul.bf16.gmra.mxu0 %v103
  %v176 = vpop.f32.mrf.mxu0
  %v177 = vadd.f32 0.0, %v176
  %v178 = vpop.f32.mrf.mxu0
  %v179 = vadd.f32 0.0, %v178
  %180 = vmatmul.bf16.gmra.mxu0 %v104
  %v181 = vpop.f32.mrf.mxu0
  %v182 = vadd.f32 0.0, %v181
  %v183 = vpop.f32.mrf.mxu0
  %v184 = vadd.f32 0.0, %v183
  %185 = vmatmul.bf16.gmra.mxu0 %v105
  %v186 = vpop.f32.mrf.mxu0
  %v187 = vadd.f32 0.0, %v186
  %v188 = vpop.f32.mrf.mxu0
  %v189 = vadd.f32 0.0, %v188
  %190 = vmatmul.bf16.gmra.mxu0 %v106
  %v191 = vpop.f32.mrf.mxu0
  %v192 = vadd.f32 0.0, %v191
  %v193 = vpop.f32.mrf.mxu0
  %v194 = vadd.f32 0.0, %v193
  %195 = vmatmul.bf16.gmra.mxu0 %v107
  %v196 = vpop.f32.mrf.mxu0
  %v197 = vadd.f32 0.0, %v196
  %v198 = vpop.f32.mrf.mxu0
  %v199 = vadd.f32 0.0, %v198
  %200 = vmatmul.bf16.gmra.mxu0 %v108
  %v201 = vpop.f32.mrf.mxu0
  %v202 = vadd.f32 0.0, %v201
  %v203 = vpop.f32.mrf.mxu0
  %v204 = vadd.f32 0.0, %v203
  %205 = vmatmul.bf16.gmra.mxu0 %v109
  %v206 = vpop.f32.mrf.mxu0
  %v207 = vadd.f32 0.0, %v206
  %v208 = vpop.f32.mrf.mxu0
  %v209 = vadd.f32 0.0, %v208
  %210 = vmatmul.bf16.gmra.mxu0 %v110
  %v211 = vpop.f32.mrf.mxu0
  %v212 = vadd.f32 0.0, %v211
  %v213 = vpop.f32.mrf.mxu0
  %v214 = vadd.f32 0.0, %v213
  %215 = vdwg.mxu0
  %v216 = vpack.c.bf16 %v179, %v177
  %v217 = vpack.c.bf16 %v184, %v182
  %v218 = vpack.c.bf16 %v189, %v187
  %v219 = vpack.c.bf16 %v194, %v192
  %v220 = vpack.c.bf16 %v199, %v197
  %v221 = vpack.c.bf16 %v204, %v202
  %v222 = vpack.c.bf16 %v209, %v207
  %v223 = vpack.c.bf16 %v214, %v212
  %v224 = vld [vmem:[%s3] sm:$0x1]
  %v226 = vperm.slane %v224, 0
  %v244 = vunpack.c.l.b16 %v23
  %v245 = vunpack.c.l.b16 %v24
  %v246 = vunpack.c.l.b16 %v25
  %v247 = vunpack.c.l.b16 %v26
  %v248 = vunpack.c.l.b16 %v27
  %v249 = vunpack.c.l.b16 %v28
  %v250 = vunpack.c.l.b16 %v29
  %v251 = vunpack.c.l.b16 %v30
  %v252 = vunpack.c.l.b16 %v31
  %v253 = vunpack.c.l.b16 %v32
  %v254 = vunpack.c.l.b16 %v33
  %v255 = vunpack.c.l.b16 %v34
  %v256 = vunpack.c.l.b16 %v35
  %v257 = vunpack.c.l.b16 %v36
  %v258 = vunpack.c.l.b16 %v37
  %v259 = vunpack.c.l.b16 %v38
  %v260 = vpack.c.b16 %v245, %v244
  %v261 = vpack.c.b16 %v247, %v246
  %v262 = vpack.c.b16 %v249, %v248
  %v263 = vpack.c.b16 %v251, %v250
  %v264 = vpack.c.b16 %v253, %v252
  %v265 = vpack.c.b16 %v255, %v254
  %v266 = vpack.c.b16 %v257, %v256
  %v267 = vpack.c.b16 %v259, %v258
  %276 = vmatpush.bf16.msra.mxu0 %v223
  %277 = vmatpush.bf16.msra.mxu0 %v222
  %278 = vmatpush.bf16.msra.mxu0 %v221
  %279 = vmatpush.bf16.msra.mxu0 %v220
  %280 = vmatpush.bf16.msra.mxu0 %v219
  %281 = vmatpush.bf16.msra.mxu0 %v218
  %282 = vmatpush.bf16.msra.mxu0 %v217
  %283 = vmatpush.bf16.msra.mxu0 %v216
  %284 = vmatmul.bf16.gmra.mxu0 %v260
  %v285 = vpop.f32.mrf.mxu0
  %v286 = vadd.f32 %v226, %v285
  %v287 = vpop.f32.mrf.mxu0
  %v288 = vadd.f32 %v226, %v287
  %289 = vmatmul.bf16.gmra.mxu0 %v261
  %v290 = vpop.f32.mrf.mxu0
  %v291 = vadd.f32 %v226, %v290
  %v292 = vpop.f32.mrf.mxu0
  %v293 = vadd.f32 %v226, %v292
  %294 = vmatmul.bf16.gmra.mxu0 %v262
  %v295 = vpop.f32.mrf.mxu0
  %v296 = vadd.f32 %v226, %v295
  %v297 = vpop.f32.mrf.mxu0
  %v298 = vadd.f32 %v226, %v297
  %299 = vmatmul.bf16.gmra.mxu0 %v263
  %v300 = vpop.f32.mrf.mxu0
  %v301 = vadd.f32 %v226, %v300
  %v302 = vpop.f32.mrf.mxu0
  %v303 = vadd.f32 %v226, %v302
  %304 = vmatmul.bf16.gmra.mxu0 %v264
  %v305 = vpop.f32.mrf.mxu0
  %v306 = vadd.f32 %v226, %v305
  %v307 = vpop.f32.mrf.mxu0
  %v308 = vadd.f32 %v226, %v307
  %309 = vmatmul.bf16.gmra.mxu0 %v265
  %v310 = vpop.f32.mrf.mxu0
  %v311 = vadd.f32 %v226, %v310
  %v312 = vpop.f32.mrf.mxu0
  %v313 = vadd.f32 %v226, %v312
  %314 = vmatmul.bf16.gmra.mxu0 %v266
  %v315 = vpop.f32.mrf.mxu0
  %v316 = vadd.f32 %v226, %v315
  %v317 = vpop.f32.mrf.mxu0
  %v318 = vadd.f32 %v226, %v317
  %319 = vmatmul.bf16.gmra.mxu0 %v267
  %v320 = vpop.f32.mrf.mxu0
  %v321 = vadd.f32 %v226, %v320
  %v322 = vpop.f32.mrf.mxu0
  %v323 = vadd.f32 %v226, %v322
  %324 = vdwg.mxu0
  %v325 = vmax.f32 %v286, 0.0
  %v326 = vmax.f32 %v288, 0.0
  %v327 = vmax.f32 %v291, 0.0
  %v328 = vmax.f32 %v293, 0.0
  %v329 = vmax.f32 %v296, 0.0
  %v330 = vmax.f32 %v298, 0.0
  %v331 = vmax.f32 %v301, 0.0
  %v332 = vmax.f32 %v303, 0.0
  %v333 = vmax.f32 %v306, 0.0
  %v334 = vmax.f32 %v308, 0.0
  %v335 = vmax.f32 %v311, 0.0
  %v336 = vmax.f32 %v313, 0.0
  %v337 = vmax.f32 %v316, 0.0
  %v338 = vmax.f32 %v318, 0.0
  %v339 = vmax.f32 %v321, 0.0
  %v340 = vmax.f32 %v323, 0.0
  %v341 = vpack.c.bf16 %v326, %v325
  %v342 = vpack.c.bf16 %v328, %v327
  %v343 = vpack.c.bf16 %v330, %v329
  %v344 = vpack.c.bf16 %v332, %v331
  %v345 = vpack.c.bf16 %v334, %v333
  %v346 = vpack.c.bf16 %v336, %v335
  %v347 = vpack.c.bf16 %v338, %v337
  %v348 = vpack.c.bf16 %v340, %v339
  %v349 = vld [vmem:[%s4] sm:$0xf]
  %v350 = vld [vmem:[%s4 + $0x4] sm:$0xf]
  %v351 = vld [vmem:[%s4 + $0x8] sm:$0xf]
  %v352 = vld [vmem:[%s4 + $0xc] sm:$0xf]
  %v353 = vld [vmem:[%s4 + $0x10] sm:$0xf]
  %v354 = vld [vmem:[%s4 + $0x14] sm:$0xf]
  %v355 = vld [vmem:[%s4 + $0x18] sm:$0xf]
  %v356 = vld [vmem:[%s4 + $0x1c] sm:$0xf]
  %v357 = vld [vmem:[%s4 + $0x20] sm:$0xf]
  %v358 = vld [vmem:[%s4 + $0x24] sm:$0xf]
  %v359 = vld [vmem:[%s4 + $0x28] sm:$0xf]
  %v360 = vld [vmem:[%s4 + $0x2c] sm:$0xf]
  %v361 = vld [vmem:[%s4 + $0x30] sm:$0xf]
  %v362 = vld [vmem:[%s4 + $0x34] sm:$0xf]
  %v363 = vld [vmem:[%s4 + $0x38] sm:$0xf]
  %v364 = vld [vmem:[%s4 + $0x3c] sm:$0xf]
  %v381 = vunpack.c.l.b16 %v349
  %v382 = vunpack.c.l.b16 %v350
  %v383 = vunpack.c.l.b16 %v351
  %v384 = vunpack.c.l.b16 %v352
  %v385 = vunpack.c.l.b16 %v353
  %v386 = vunpack.c.l.b16 %v354
  %v387 = vunpack.c.l.b16 %v355
  %v388 = vunpack.c.l.b16 %v356
  %v389 = vunpack.c.l.b16 %v357
  %v390 = vunpack.c.l.b16 %v358
  %v391 = vunpack.c.l.b16 %v359
  %v392 = vunpack.c.l.b16 %v360
  %v393 = vunpack.c.l.b16 %v361
  %v394 = vunpack.c.l.b16 %v362
  %v395 = vunpack.c.l.b16 %v363
  %v396 = vunpack.c.l.b16 %v364
  %v397 = vpack.c.b16 %v382, %v381
  %v398 = vpack.c.b16 %v384, %v383
  %v399 = vpack.c.b16 %v386, %v385
  %v400 = vpack.c.b16 %v388, %v387
  %v401 = vpack.c.b16 %v390, %v389
  %v402 = vpack.c.b16 %v392, %v391
  %v403 = vpack.c.b16 %v394, %v393
  %v404 = vpack.c.b16 %v396, %v395
  %413 = vmatpush.bf16.msra.mxu0 %v404
  %414 = vmatpush.bf16.msra.mxu0 %v403
  %415 = vmatpush.bf16.msra.mxu0 %v402
  %416 = vmatpush.bf16.msra.mxu0 %v401
  %417 = vmatpush.bf16.msra.mxu0 %v400
  %418 = vmatpush.bf16.msra.mxu0 %v399
  %419 = vmatpush.bf16.msra.mxu0 %v398
  %420 = vmatpush.bf16.msra.mxu0 %v397
  %421 = vmatmul.bf16.gmra.mxu0 %v341
  %v422 = vpop.f32.mrf.mxu0
  %v423 = vadd.f32 0.0, %v422
  %v424 = vpop.f32.mrf.mxu0
  %v425 = vadd.f32 0.0, %v424
  %426 = vmatmul.bf16.gmra.mxu0 %v342
  %v427 = vpop.f32.mrf.mxu0
  %v428 = vadd.f32 0.0, %v427
  %v429 = vpop.f32.mrf.mxu0
  %v430 = vadd.f32 0.0, %v429
  %431 = vmatmul.bf16.gmra.mxu0 %v343
  %v432 = vpop.f32.mrf.mxu0
  %v433 = vadd.f32 0.0, %v432
  %v434 = vpop.f32.mrf.mxu0
  %v435 = vadd.f32 0.0, %v434
  %436 = vmatmul.bf16.gmra.mxu0 %v344
  %v437 = vpop.f32.mrf.mxu0
  %v438 = vadd.f32 0.0, %v437
  %v439 = vpop.f32.mrf.mxu0
  %v440 = vadd.f32 0.0, %v439
  %441 = vmatmul.bf16.gmra.mxu0 %v345
  %v442 = vpop.f32.mrf.mxu0
  %v443 = vadd.f32 0.0, %v442
  %v444 = vpop.f32.mrf.mxu0
  %v445 = vadd.f32 0.0, %v444
  %446 = vmatmul.bf16.gmra.mxu0 %v346
  %v447 = vpop.f32.mrf.mxu0
  %v448 = vadd.f32 0.0, %v447
  %v449 = vpop.f32.mrf.mxu0
  %v450 = vadd.f32 0.0, %v449
  %451 = vmatmul.bf16.gmra.mxu0 %v347
  %v452 = vpop.f32.mrf.mxu0
  %v453 = vadd.f32 0.0, %v452
  %v454 = vpop.f32.mrf.mxu0
  %v455 = vadd.f32 0.0, %v454
  %456 = vmatmul.bf16.gmra.mxu0 %v348
  %v457 = vpop.f32.mrf.mxu0
  %v458 = vadd.f32 0.0, %v457
  %v459 = vpop.f32.mrf.mxu0
  %v460 = vadd.f32 0.0, %v459
  %461 = vdwg.mxu0
  %v462 = vpack.c.bf16 %v425, %v423
  %v463 = vpack.c.bf16 %v430, %v428
  %v464 = vpack.c.bf16 %v435, %v433
  %v465 = vpack.c.bf16 %v440, %v438
  %v466 = vpack.c.bf16 %v445, %v443
  %v467 = vpack.c.bf16 %v450, %v448
  %v468 = vpack.c.bf16 %v455, %v453
  %v469 = vpack.c.bf16 %v460, %v458
  %v470 = vld [vmem:[%s5] sm:$0x1]
  %v472 = vperm.slane %v470, 0
  %474 = vmatpush.bf16.msra.mxu0 %v469
  %475 = vmatpush.bf16.msra.mxu0 %v468
  %476 = vmatpush.bf16.msra.mxu0 %v467
  %477 = vmatpush.bf16.msra.mxu0 %v466
  %478 = vmatpush.bf16.msra.mxu0 %v465
  %479 = vmatpush.bf16.msra.mxu0 %v464
  %480 = vmatpush.bf16.msra.mxu0 %v463
  %481 = vmatpush.bf16.msra.mxu0 %v462
  %482 = vmatmul.bf16.gmra.mxu0 %v260
  %v483 = vpop.f32.mrf.mxu0
  %v484 = vadd.f32 %v472, %v483
  %v485 = vpop.f32.mrf.mxu0
  %v486 = vadd.f32 %v472, %v485
  %487 = vmatmul.bf16.gmra.mxu0 %v261
  %v488 = vpop.f32.mrf.mxu0
  %v489 = vadd.f32 %v472, %v488
  %v490 = vpop.f32.mrf.mxu0
  %v491 = vadd.f32 %v472, %v490
  %492 = vmatmul.bf16.gmra.mxu0 %v262
  %v493 = vpop.f32.mrf.mxu0
  %v494 = vadd.f32 %v472, %v493
  %v495 = vpop.f32.mrf.mxu0
  %v496 = vadd.f32 %v472, %v495
  %497 = vmatmul.bf16.gmra.mxu0 %v263
  %v498 = vpop.f32.mrf.mxu0
  %v499 = vadd.f32 %v472, %v498
  %v500 = vpop.f32.mrf.mxu0
  %v501 = vadd.f32 %v472, %v500
  %502 = vmatmul.bf16.gmra.mxu0 %v264
  %v503 = vpop.f32.mrf.mxu0
  %v504 = vadd.f32 %v472, %v503
  %v505 = vpop.f32.mrf.mxu0
  %v506 = vadd.f32 %v472, %v505
  %507 = vmatmul.bf16.gmra.mxu0 %v265
  %v508 = vpop.f32.mrf.mxu0
  %v509 = vadd.f32 %v472, %v508
  %v510 = vpop.f32.mrf.mxu0
  %v511 = vadd.f32 %v472, %v510
  %512 = vmatmul.bf16.gmra.mxu0 %v266
  %v513 = vpop.f32.mrf.mxu0
  %v514 = vadd.f32 %v472, %v513
  %v515 = vpop.f32.mrf.mxu0
  %v516 = vadd.f32 %v472, %v515
  %517 = vmatmul.bf16.gmra.mxu0 %v267
  %v518 = vpop.f32.mrf.mxu0
  %v519 = vadd.f32 %v472, %v518
  %v520 = vpop.f32.mrf.mxu0
  %v521 = vadd.f32 %v472, %v520
  %522 = vdwg.mxu0
  %v523 = vlaneseq
  %v524 = vand.u32 %v523, 127
  %vm525 = vcmp.lt.s32.totalorder %v524, 8
  %v526 = vsel %vm525, %v484, -inf
  %v527 = vsel %vm525, %v486, -inf
  %v528 = vsel %vm525, %v489, -inf
  %v529 = vsel %vm525, %v491, -inf
  %v530 = vsel %vm525, %v494, -inf
  %v531 = vsel %vm525, %v496, -inf
  %v532 = vsel %vm525, %v499, -inf
  %v533 = vsel %vm525, %v501, -inf
  %v534 = vsel %vm525, %v504, -inf
  %v535 = vsel %vm525, %v506, -inf
  %v536 = vsel %vm525, %v509, -inf
  %v537 = vsel %vm525, %v511, -inf
  %v538 = vsel %vm525, %v514, -inf
  %v539 = vsel %vm525, %v516, -inf
  %v540 = vsel %vm525, %v519, -inf
  %v541 = vsel %vm525, %v521, -inf
  %542 = vmax.xlane.f32.xlu0 %v526
  %v543 = vpop.xlane.xlu0 %542
  %544 = vmax.xlane.f32.xlu0 %v527
  %v545 = vpop.xlane.xlu0 %544
  %546 = vmax.xlane.f32.xlu0 %v528
  %v547 = vpop.xlane.xlu0 %546
  %548 = vmax.xlane.f32.xlu0 %v529
  %v549 = vpop.xlane.xlu0 %548
  %550 = vmax.xlane.f32.xlu0 %v530
  %v551 = vpop.xlane.xlu0 %550
  %552 = vmax.xlane.f32.xlu0 %v531
  %v553 = vpop.xlane.xlu0 %552
  %554 = vmax.xlane.f32.xlu0 %v532
  %v555 = vpop.xlane.xlu0 %554
  %556 = vmax.xlane.f32.xlu0 %v533
  %v557 = vpop.xlane.xlu0 %556
  %558 = vmax.xlane.f32.xlu0 %v534
  %v559 = vpop.xlane.xlu0 %558
  %560 = vmax.xlane.f32.xlu0 %v535
  %v561 = vpop.xlane.xlu0 %560
  %562 = vmax.xlane.f32.xlu0 %v536
  %v563 = vpop.xlane.xlu0 %562
  %564 = vmax.xlane.f32.xlu0 %v537
  %v565 = vpop.xlane.xlu0 %564
  %566 = vmax.xlane.f32.xlu0 %v538
  %v567 = vpop.xlane.xlu0 %566
  %568 = vmax.xlane.f32.xlu0 %v539
  %v569 = vpop.xlane.xlu0 %568
  %570 = vmax.xlane.f32.xlu0 %v540
  %v571 = vpop.xlane.xlu0 %570
  %572 = vmax.xlane.f32.xlu0 %v541
  %v573 = vpop.xlane.xlu0 %572
  %v574 = vsub.f32 %v526, %v543
  %v575 = vsub.f32 %v527, %v545
  %v576 = vsub.f32 %v528, %v547
  %v577 = vsub.f32 %v529, %v549
  %v578 = vsub.f32 %v530, %v551
  %v579 = vsub.f32 %v531, %v553
  %v580 = vsub.f32 %v532, %v555
  %v581 = vsub.f32 %v533, %v557
  %v582 = vsub.f32 %v534, %v559
  %v583 = vsub.f32 %v535, %v561
  %v584 = vsub.f32 %v536, %v563
  %v585 = vsub.f32 %v537, %v565
  %v586 = vsub.f32 %v538, %v567
  %v587 = vsub.f32 %v539, %v569
  %v588 = vsub.f32 %v540, %v571
  %v589 = vsub.f32 %v541, %v573
  %v590 = vmul.f32 %v574, 1.442695
  %v591 = vpow.pop %v590
  %v592 = vmul.f32 %v575, 1.442695
  %v593 = vpow.pop %v592
  %v594 = vmul.f32 %v576, 1.442695
  %v595 = vpow.pop %v594
  %v596 = vmul.f32 %v577, 1.442695
  %v597 = vpow.pop %v596
  %v598 = vmul.f32 %v578, 1.442695
  %v599 = vpow.pop %v598
  %v600 = vmul.f32 %v579, 1.442695
  %v601 = vpow.pop %v600
  %v602 = vmul.f32 %v580, 1.442695
  %v603 = vpow.pop %v602
  %v604 = vmul.f32 %v581, 1.442695
  %v605 = vpow.pop %v604
  %v606 = vmul.f32 %v582, 1.442695
  %v607 = vpow.pop %v606
  %v608 = vmul.f32 %v583, 1.442695
  %v609 = vpow.pop %v608
  %v610 = vmul.f32 %v584, 1.442695
  %v611 = vpow.pop %v610
  %v612 = vmul.f32 %v585, 1.442695
  %v613 = vpow.pop %v612
  %v614 = vmul.f32 %v586, 1.442695
  %v615 = vpow.pop %v614
  %v616 = vmul.f32 %v587, 1.442695
  %v617 = vpow.pop %v616
  %v618 = vmul.f32 %v588, 1.442695
  %v619 = vpow.pop %v618
  %v620 = vmul.f32 %v589, 1.442695
  %v621 = vpow.pop %v620
  %v622 = vsel %vm525, %v591, 0.0
  %v623 = vsel %vm525, %v593, 0.0
  %v624 = vsel %vm525, %v595, 0.0
  %v625 = vsel %vm525, %v597, 0.0
  %v626 = vsel %vm525, %v599, 0.0
  %v627 = vsel %vm525, %v601, 0.0
  %v628 = vsel %vm525, %v603, 0.0
  %v629 = vsel %vm525, %v605, 0.0
  %v630 = vsel %vm525, %v607, 0.0
  %v631 = vsel %vm525, %v609, 0.0
  %v632 = vsel %vm525, %v611, 0.0
  %v633 = vsel %vm525, %v613, 0.0
  %v634 = vsel %vm525, %v615, 0.0
  %v635 = vsel %vm525, %v617, 0.0
  %v636 = vsel %vm525, %v619, 0.0
  %v637 = vsel %vm525, %v621, 0.0
  %638 = vadd.xlane.f32.xlu0 %v622
  %v639 = vpop.xlane.xlu0 %638
  %640 = vadd.xlane.f32.xlu0 %v623
  %v641 = vpop.xlane.xlu0 %640
  %642 = vadd.xlane.f32.xlu0 %v624
  %v643 = vpop.xlane.xlu0 %642
  %644 = vadd.xlane.f32.xlu0 %v625
  %v645 = vpop.xlane.xlu0 %644
  %646 = vadd.xlane.f32.xlu0 %v626
  %v647 = vpop.xlane.xlu0 %646
  %648 = vadd.xlane.f32.xlu0 %v627
  %v649 = vpop.xlane.xlu0 %648
  %650 = vadd.xlane.f32.xlu0 %v628
  %v651 = vpop.xlane.xlu0 %650
  %652 = vadd.xlane.f32.xlu0 %v629
  %v653 = vpop.xlane.xlu0 %652
  %654 = vadd.xlane.f32.xlu0 %v630
  %v655 = vpop.xlane.xlu0 %654
  %656 = vadd.xlane.f32.xlu0 %v631
  %v657 = vpop.xlane.xlu0 %656
  %658 = vadd.xlane.f32.xlu0 %v632
  %v659 = vpop.xlane.xlu0 %658
  %660 = vadd.xlane.f32.xlu0 %v633
  %v661 = vpop.xlane.xlu0 %660
  %662 = vadd.xlane.f32.xlu0 %v634
  %v663 = vpop.xlane.xlu0 %662
  %664 = vadd.xlane.f32.xlu0 %v635
  %v665 = vpop.xlane.xlu0 %664
  %666 = vadd.xlane.f32.xlu0 %v636
  %v667 = vpop.xlane.xlu0 %666
  %668 = vadd.xlane.f32.xlu0 %v637
  %v669 = vpop.xlane.xlu0 %668
  %v670 = vlog2.pop %v639
  %v671 = vmul.f32 %v670, 0.6931472
  %v672 = vlog2.pop %v641
  %v673 = vmul.f32 %v672, 0.6931472
  %v674 = vlog2.pop %v643
  %v675 = vmul.f32 %v674, 0.6931472
  %v676 = vlog2.pop %v645
  %v677 = vmul.f32 %v676, 0.6931472
  %v678 = vlog2.pop %v647
  %v679 = vmul.f32 %v678, 0.6931472
  %v680 = vlog2.pop %v649
  %v681 = vmul.f32 %v680, 0.6931472
  %v682 = vlog2.pop %v651
  %v683 = vmul.f32 %v682, 0.6931472
  %v684 = vlog2.pop %v653
  %v685 = vmul.f32 %v684, 0.6931472
  %v686 = vlog2.pop %v655
  %v687 = vmul.f32 %v686, 0.6931472
  %v688 = vlog2.pop %v657
  %v689 = vmul.f32 %v688, 0.6931472
  %v690 = vlog2.pop %v659
  %v691 = vmul.f32 %v690, 0.6931472
  %v692 = vlog2.pop %v661
  %v693 = vmul.f32 %v692, 0.6931472
  %v694 = vlog2.pop %v663
  %v695 = vmul.f32 %v694, 0.6931472
  %v696 = vlog2.pop %v665
  %v697 = vmul.f32 %v696, 0.6931472
  %v698 = vlog2.pop %v667
  %v699 = vmul.f32 %v698, 0.6931472
  %v700 = vlog2.pop %v669
  %v701 = vmul.f32 %v700, 0.6931472
  %v702 = vsub.f32 %v574, %v671
  %v703 = vsub.f32 %v575, %v673
  %v704 = vsub.f32 %v576, %v675
  %v705 = vsub.f32 %v577, %v677
  %v706 = vsub.f32 %v578, %v679
  %v707 = vsub.f32 %v579, %v681
  %v708 = vsub.f32 %v580, %v683
  %v709 = vsub.f32 %v581, %v685
  %v710 = vsub.f32 %v582, %v687
  %v711 = vsub.f32 %v583, %v689
  %v712 = vsub.f32 %v584, %v691
  %v713 = vsub.f32 %v585, %v693
  %v714 = vsub.f32 %v586, %v695
  %v715 = vsub.f32 %v587, %v697
  %v716 = vsub.f32 %v588, %v699
  %v717 = vsub.f32 %v589, %v701
  %v718 = vsel %vm525, %v702, 0.0
  %v719 = vsel %vm525, %v703, 0.0
  %v720 = vsel %vm525, %v704, 0.0
  %v721 = vsel %vm525, %v705, 0.0
  %v722 = vsel %vm525, %v706, 0.0
  %v723 = vsel %vm525, %v707, 0.0
  %v724 = vsel %vm525, %v708, 0.0
  %v725 = vsel %vm525, %v709, 0.0
  %v726 = vsel %vm525, %v710, 0.0
  %v727 = vsel %vm525, %v711, 0.0
  %v728 = vsel %vm525, %v712, 0.0
  %v729 = vsel %vm525, %v713, 0.0
  %v730 = vsel %vm525, %v714, 0.0
  %v731 = vsel %vm525, %v715, 0.0
  %v732 = vsel %vm525, %v716, 0.0
  %v733 = vsel %vm525, %v717, 0.0
  %734 = vst [vmem:[%s6] sm:$0xff] %v718
  %735 = vst [vmem:[%s6 + $0x8] sm:$0xff] %v719
  %736 = vst [vmem:[%s6 + $0x10] sm:$0xff] %v720
  %737 = vst [vmem:[%s6 + $0x18] sm:$0xff] %v721
  %738 = vst [vmem:[%s6 + $0x20] sm:$0xff] %v722
  %739 = vst [vmem:[%s6 + $0x28] sm:$0xff] %v723
  %740 = vst [vmem:[%s6 + $0x30] sm:$0xff] %v724
  %741 = vst [vmem:[%s6 + $0x38] sm:$0xff] %v725
  %742 = vst [vmem:[%s6 + $0x40] sm:$0xff] %v726
  %743 = vst [vmem:[%s6 + $0x48] sm:$0xff] %v727
  %744 = vst [vmem:[%s6 + $0x50] sm:$0xff] %v728
  %745 = vst [vmem:[%s6 + $0x58] sm:$0xff] %v729
  %746 = vst [vmem:[%s6 + $0x60] sm:$0xff] %v730
  %747 = vst [vmem:[%s6 + $0x68] sm:$0xff] %v731
  %748 = vst [vmem:[%s6 + $0x70] sm:$0xff] %v732
  %749 = vst [vmem:[%s6 + $0x78] sm:$0xff] %v733
  // Predicated region
  $region26: #{_gcn_forward_fused.1} parent=0 // pred_check
    _
  $region27: #{_gcn_forward_fused.1} parent=0 // pred_check_branch
    %751 = sbr.rel (0) target = $region29
  $region28: #{_gcn_forward_fused.1} parent=0 // pred_region
    _
  $region29: #{_gcn_forward_fused.1} parent=0 // pred_fallthru
    _
  // Predicated region
  $region30: #{_gcn_forward_fused.1} parent=0 // pred_check
    _
  $region31: #{_gcn_forward_fused.1} parent=0 // pred_check_branch
    %753 = sbr.rel (0) target = $region33
  $region32: #{_gcn_forward_fused.1} parent=0 // pred_region
    _
  $region33: #{_gcn_forward_fused.1} parent=0 // pred_fallthru
    _

</llo_original>
